<compile_context>
chip_gen: v6e
topology: v6e:2x2x1
jax: 0.10.0
libtpu: 0.0.40
codegen_flags: <defaults>
</compile_context>

<pallas_src>
import math

import jax
import jax.numpy as jnp
from jax.experimental import pallas as pl
from jax.experimental.pallas import tpu as pltpu

INV_SQRT2 = 1.0 / math.sqrt(2.0)
LN_EPS = 1e-5  # torch.nn.LayerNorm default


def _round_up(x: int, m: int) -> int:
    return (x + m - 1) // m * m


def _block_mlp_kernel(x_ref, lnw_ref, lnb_ref, w1_ref, b1_ref, w2_ref, b2_ref,
                      g2_ref, o_ref):
    # Single read of the row tile; kept in f32 for LayerNorm and the residual.
    x = x_ref[...].astype(jnp.float32)                       # (tm, Din)

    # ---- norm2: LayerNorm over the feature (lane) dim, f32, two-pass variance.
    mean = jnp.mean(x, axis=-1, keepdims=True)
    xc = x - mean
    var = jnp.mean(xc * xc, axis=-1, keepdims=True)
    xn = xc * jax.lax.rsqrt(var + LN_EPS)
    xn = xn * lnw_ref[...] + lnb_ref[...]

    # ---- fc1: bf16 MXU operands (in-kernel cast), f32 accumulation.
    h = jnp.dot(xn.astype(jnp.bfloat16), w1_ref[...],
                preferred_element_type=jnp.float32)
    h = h + b1_ref[...]
    # Exact (erf) GELU, matching torch.nn.GELU default numerics.
    # (jax.nn.gelu(h, approximate=True) would shift work VALU->EUP but changes
    #  numerics vs the PyTorch reference, so it is not used.)
    h = 0.5 * h * (1.0 + jax.lax.erf(h * INV_SQRT2))
    # ffn_ln is nn.Identity() (subln=False) -> no-op.

    # ---- fc2.
    o = jnp.dot(h.astype(jnp.bfloat16), w2_ref[...],
                preferred_element_type=jnp.float32)
    o = o + b2_ref[...]

    # Dropout(p=0) / DropPath(p=0) -> identity.
    # ---- fused Block epilogue: LayerScale (gamma_2) + residual add.
    o_ref[...] = (x + g2_ref[...] * o).astype(o_ref.dtype)


def prepare_block_mlp_params(norm2_w, norm2_b, w1, b1, w2, b2, gamma_2=None):
    """One-time (model-init) conversion of the Block MLP-branch parameters.

    Weights are stored [in, out] (i.e. already transposed from PyTorch
    nn.Linear's [out, in]), so the kernel computes x @ W + b.  Done once and
    cached so no per-forward pad/cast passes touch HBM.
    """
    dout = w2.shape[1]
    if gamma_2 is None:  # Block with init_values=None -> no LayerScale
        gamma_2 = jnp.ones((dout,), jnp.float32)
    return dict(
        lnw=jnp.asarray(norm2_w, jnp.float32).reshape(1, -1),
        lnb=jnp.asarray(norm2_b, jnp.float32).reshape(1, -1),
        w1=jnp.asarray(w1, jnp.bfloat16),
        b1=jnp.asarray(b1, jnp.float32).reshape(1, -1),
        w2=jnp.asarray(w2, jnp.bfloat16),
        b2=jnp.asarray(b2, jnp.float32).reshape(1, -1),
        g2=jnp.asarray(gamma_2, jnp.float32).reshape(1, -1),
    )


def block_mlp_branch(x, params, *, tm=128):
    """x: [B, N, D]  ->  x + gamma_2 * Mlp(LayerNorm(x)),  shape [B, N, D]."""
    B, N, Din = x.shape
    Dh = params["w1"].shape[1]
    Dout = params["w2"].shape[1]
    M = B * N

    # Row tile: default 128 (full MXU M on v5e, fine on v6e/v7x).  Shrink when
    # the grid would have < 4 steps so the "parallel" axis can still shard
    # across megacore TensorCores; keep it a multiple of 8 (sublane).
    tm_eff = max(8, min(tm, _round_up(M, 8)))
    while tm_eff > 8 and pl.cdiv(M, tm_eff) < 4:
        tm_eff //= 2
    grid = (pl.cdiv(M, tm_eff),)

    x2d = x.reshape(M, Din)
    out_dtype = x.dtype
    xb = jnp.dtype(x.dtype).itemsize
    ob = jnp.dtype(out_dtype).itemsize

    # VMEM budget from the actual buffer plan (+ headroom).
    resident = (Din * Dh + Dh * Dout) * 2 + (2 * Din + Dh + 2 * Dout) * 4
    streamed = 2 * tm_eff * (Din * xb + Dout * ob)          # double-buffered x/out tiles
    interm = tm_eff * Dh * (4 + 2) + 4 * tm_eff * Din * 4   # h (f32+bf16), LN temps
    vmem_bytes = int(1.25 * (resident + streamed + interm)) + (4 << 20)
    vmem_bytes = min(max(vmem_bytes, 32 << 20), 64 << 20)

    def resident_spec(shape):
        # Constant index_map -> fetched once; single-buffer it (halves footprint).
        return pl.BlockSpec(shape, lambda i: (0, 0), pipeline_mode=pl.Buffered(1))

    cost = pl.CostEstimate(
        flops=2 * M * (Din * Dh + Dh * Dout) + 12 * M * Din,
        transcendentals=M * Dh,  # erf per hidden element (advisory)
        bytes_accessed=(M * Din * xb + (Din * Dh + Dh * Dout) * 2
                        + (2 * Din + Dh + 2 * Dout) * 4 + M * Dout * ob),
    )

    out2d = pl.pallas_call(
        _block_mlp_kernel,
        out_shape=jax.ShapeDtypeStruct((M, Dout), out_dtype),
        grid_spec=pltpu.PrefetchScalarGridSpec(
            num_scalar_prefetch=0,
            grid=grid,
            in_specs=[
                pl.BlockSpec((tm_eff, Din), lambda i: (i, 0)),  # x (streamed)
                resident_spec((1, Din)),                        # norm2 weight
                resident_spec((1, Din)),                        # norm2 bias
                resident_spec((Din, Dh)),                       # fc1 weight (bf16)
                resident_spec((1, Dh)),                         # fc1 bias
                resident_spec((Dh, Dout)),                      # fc2 weight (bf16)
                resident_spec((1, Dout)),                       # fc2 bias
                resident_spec((1, Dout)),                       # gamma_2
            ],
            out_specs=pl.BlockSpec((tm_eff, Dout), lambda i: (i, 0)),
        ),
        compiler_params=pltpu.CompilerParams(
            dimension_semantics=("parallel",),   # v7x: shard rows across 2 TCs
            vmem_limit_bytes=vmem_bytes,
        ),
        cost_estimate=cost,
    )(x2d, params["lnw"], params["lnb"], params["w1"], params["b1"],
      params["w2"], params["b2"], params["g2"])

    return out2d.reshape(B, N, Dout)


def block_mlp_branch_reference(x, norm2_w, norm2_b, w1, b1, w2, b2, gamma_2):
    """Pure-f32 reference: x + gamma_2 * Mlp(LayerNorm(x)) (PyTorch semantics)."""
    mean = jnp.mean(x, axis=-1, keepdims=True)
    var = jnp.mean((x - mean) ** 2, axis=-1, keepdims=True)
    xn = (x - mean) / jnp.sqrt(var + LN_EPS) * norm2_w + norm2_b
    h = jnp.einsum("bnd,dh->bnh", xn, w1) + b1
    h = 0.5 * h * (1.0 + jax.lax.erf(h * INV_SQRT2))
    mlp = jnp.einsum("bnh,ho->bno", h, w2) + b2
    return x + gamma_2 * mlp


if __name__ == "__main__":
    # Small shapes consistent with Block(dim=32, mlp_ratio=4.0, init_values=0.1):
    # in_features = out_features = 32, hidden = 128, tokens = 2 * 8 = 16.
    B, N, Din = 2, 8, 32
    Dh = int(Din * 4.0)
    Dout = Din

    key = jax.random.PRNGKey(0)
    kx, k1, k2, k3, k4, k5, k6, k7 = jax.random.split(key, 8)

    x = jax.random.normal(kx, (B, N, Din), dtype=jnp.float32)
    norm2_w = 1.0 + 0.05 * jax.random.normal(k5, (Din,), dtype=jnp.float32)
    norm2_b = 0.05 * jax.random.normal(k6, (Din,), dtype=jnp.float32)
    w1 = jax.random.normal(k1, (Din, Dh), dtype=jnp.float32) * (1.0 / math.sqrt(Din))
    b1 = 0.01 * jax.random.normal(k2, (Dh,), dtype=jnp.float32)
    w2 = jax.random.normal(k3, (Dh, Dout), dtype=jnp.float32) * (1.0 / math.sqrt(Dh))
    b2 = 0.01 * jax.random.normal(k4, (Dout,), dtype=jnp.float32)
    gamma_2 = 0.1 * (1.0 + 0.1 * jax.random.normal(k7, (Dout,), dtype=jnp.float32))

    # One-time parameter conversion (model init), then the fused forward.
    params = prepare_block_mlp_params(norm2_w, norm2_b, w1, b1, w2, b2, gamma_2)
    out = block_mlp_branch(x, params, tm=128)
    out = jax.block_until_ready(out)

    ref = block_mlp_branch_reference(x, norm2_w, norm2_b, w1, b1, w2, b2, gamma_2)
    assert out.shape == (B, N, Dout)
    # bf16 MXU operands vs the f32 reference -> loosened tolerance.
    err = float(jnp.max(jnp.abs(out - ref)))
    assert jnp.allclose(out, ref, atol=5e-2, rtol=5e-2), err

    print("KERNEL_OK")
</pallas_src>

<mosaic_0001>
module attributes {stable_mosaic.version = 11 : i64} {
  func.func @_block_mlp_kernel(%arg0: i32, %arg1: memref<8x32xf32, #tpu.memory_space<vmem>>, %arg2: memref<1x32xf32, #tpu.memory_space<vmem>>, %arg3: memref<1x32xf32, #tpu.memory_space<vmem>>, %arg4: memref<32x128xbf16, #tpu.memory_space<vmem>>, %arg5: memref<1x128xf32, #tpu.memory_space<vmem>>, %arg6: memref<128x32xbf16, #tpu.memory_space<vmem>>, %arg7: memref<1x32xf32, #tpu.memory_space<vmem>>, %arg8: memref<1x32xf32, #tpu.memory_space<vmem>>, %arg9: memref<8x32xf32, #tpu.memory_space<vmem>>) attributes {dimension_semantics = [#tpu.dimension_semantics<parallel>], iteration_bounds = array<i64: 2>, scalar_prefetch = 0 : i64, scratch_operands = 0 : i64, tpu.core_type = #tpu.core_type<tc>, window_params = [{transform_indices = @transform_0, window_bounds = array<i64: 8, 32>}, {pipeline_mode = #tpu.pipeline_mode<synchronous>, transform_indices = @transform_1, window_bounds = array<i64: 1, 32>}, {pipeline_mode = #tpu.pipeline_mode<synchronous>, transform_indices = @transform_2, window_bounds = array<i64: 1, 32>}, {pipeline_mode = #tpu.pipeline_mode<synchronous>, transform_indices = @transform_3, window_bounds = array<i64: 32, 128>}, {pipeline_mode = #tpu.pipeline_mode<synchronous>, transform_indices = @transform_4, window_bounds = array<i64: 1, 128>}, {pipeline_mode = #tpu.pipeline_mode<synchronous>, transform_indices = @transform_5, window_bounds = array<i64: 128, 32>}, {pipeline_mode = #tpu.pipeline_mode<synchronous>, transform_indices = @transform_6, window_bounds = array<i64: 1, 32>}, {pipeline_mode = #tpu.pipeline_mode<synchronous>, transform_indices = @transform_7, window_bounds = array<i64: 1, 32>}, {transform_indices = @transform_8, window_bounds = array<i64: 8, 32>}]} {
    %c0 = arith.constant 0 : index
    %c0_0 = arith.constant 0 : index
    %0 = vector.load %arg1[%c0, %c0_0] : memref<8x32xf32, #tpu.memory_space<vmem>>, vector<8x32xf32>
    %cst = arith.constant dense<0.000000e+00> : vector<8xf32>
    %1 = vector.multi_reduction <add>, %0, %cst [1] : vector<8x32xf32> to vector<8xf32>
    %2 = vector.shape_cast %1 : vector<8xf32> to vector<8x1xf32>
    %cst_1 = arith.constant 3.200000e+01 : f32
    %3 = vector.broadcast %cst_1 : f32 to vector<8x1xf32>
    %4 = arith.divf %2, %3 : vector<8x1xf32>
    %5 = vector.broadcast %4 : vector<8x1xf32> to vector<8x32xf32>
    %6 = arith.subf %0, %5 : vector<8x32xf32>
    %7 = arith.mulf %6, %6 : vector<8x32xf32>
    %cst_2 = arith.constant dense<0.000000e+00> : vector<8xf32>
    %8 = vector.multi_reduction <add>, %7, %cst_2 [1] : vector<8x32xf32> to vector<8xf32>
    %9 = vector.shape_cast %8 : vector<8xf32> to vector<8x1xf32>
    %cst_3 = arith.constant 3.200000e+01 : f32
    %10 = vector.broadcast %cst_3 : f32 to vector<8x1xf32>
    %11 = arith.divf %9, %10 : vector<8x1xf32>
    %cst_4 = arith.constant 9.99999974E-6 : f32
    %12 = vector.broadcast %cst_4 : f32 to vector<8x1xf32>
    %13 = arith.addf %11, %12 : vector<8x1xf32>
    %14 = math.rsqrt %13 : vector<8x1xf32>
    %15 = vector.broadcast %14 : vector<8x1xf32> to vector<8x32xf32>
    %16 = arith.mulf %6, %15 : vector<8x32xf32>
    %c0_5 = arith.constant 0 : index
    %c0_6 = arith.constant 0 : index
    %17 = vector.load %arg2[%c0_5, %c0_6] : memref<1x32xf32, #tpu.memory_space<vmem>>, vector<1x32xf32>
    %18 = vector.broadcast %17 : vector<1x32xf32> to vector<8x32xf32>
    %19 = arith.mulf %16, %18 : vector<8x32xf32>
    %c0_7 = arith.constant 0 : index
    %c0_8 = arith.constant 0 : index
    %20 = vector.load %arg3[%c0_7, %c0_8] : memref<1x32xf32, #tpu.memory_space<vmem>>, vector<1x32xf32>
    %21 = vector.broadcast %20 : vector<1x32xf32> to vector<8x32xf32>
    %22 = arith.addf %19, %21 : vector<8x32xf32>
    %23 = arith.truncf %22 : vector<8x32xf32> to vector<8x32xbf16>
    %c0_9 = arith.constant 0 : index
    %c0_10 = arith.constant 0 : index
    %24 = vector.load %arg4[%c0_9, %c0_10] : memref<32x128xbf16, #tpu.memory_space<vmem>>, vector<32x128xbf16>
    %cst_11 = arith.constant dense<0.000000e+00> : vector<8x128xf32>
    %25 = tpu.matmul %23, %24, %cst_11 {dimension_numbers = #tpu.dot_dimension_numbers<[1], [0], [0], [1], [0, 0, 1, 1], [], []>} : vector<8x32xbf16>, vector<32x128xbf16>, vector<8x128xf32> -> vector<8x128xf32>
    %c0_12 = arith.constant 0 : index
    %c0_13 = arith.constant 0 : index
    %26 = vector.load %arg5[%c0_12, %c0_13] : memref<1x128xf32, #tpu.memory_space<vmem>>, vector<1x128xf32>
    %27 = vector.broadcast %26 : vector<1x128xf32> to vector<8x128xf32>
    %28 = arith.addf %25, %27 : vector<8x128xf32>
    %cst_14 = arith.constant 5.000000e-01 : f32
    %29 = vector.broadcast %cst_14 : f32 to vector<8x128xf32>
    %30 = arith.mulf %29, %28 : vector<8x128xf32>
    %cst_15 = arith.constant 0.707106769 : f32
    %31 = vector.broadcast %cst_15 : f32 to vector<8x128xf32>
    %32 = arith.mulf %28, %31 : vector<8x128xf32>
    %33 = math.erf %32 : vector<8x128xf32>
    %cst_16 = arith.constant 1.000000e+00 : f32
    %34 = vector.broadcast %cst_16 : f32 to vector<8x128xf32>
    %35 = arith.addf %34, %33 : vector<8x128xf32>
    %36 = arith.mulf %30, %35 : vector<8x128xf32>
    %37 = arith.truncf %36 : vector<8x128xf32> to vector<8x128xbf16>
    %c0_17 = arith.constant 0 : index
    %c0_18 = arith.constant 0 : index
    %38 = vector.load %arg6[%c0_17, %c0_18] : memref<128x32xbf16, #tpu.memory_space<vmem>>, vector<128x32xbf16>
    %cst_19 = arith.constant dense<0.000000e+00> : vector<8x32xf32>
    %39 = tpu.matmul %37, %38, %cst_19 {dimension_numbers = #tpu.dot_dimension_numbers<[1], [0], [0], [1], [0, 0, 1, 1], [], []>} : vector<8x128xbf16>, vector<128x32xbf16>, vector<8x32xf32> -> vector<8x32xf32>
    %c0_20 = arith.constant 0 : index
    %c0_21 = arith.constant 0 : index
    %40 = vector.load %arg7[%c0_20, %c0_21] : memref<1x32xf32, #tpu.memory_space<vmem>>, vector<1x32xf32>
    %41 = vector.broadcast %40 : vector<1x32xf32> to vector<8x32xf32>
    %42 = arith.addf %39, %41 : vector<8x32xf32>
    %c0_22 = arith.constant 0 : index
    %c0_23 = arith.constant 0 : index
    %43 = vector.load %arg8[%c0_22, %c0_23] : memref<1x32xf32, #tpu.memory_space<vmem>>, vector<1x32xf32>
    %44 = vector.broadcast %43 : vector<1x32xf32> to vector<8x32xf32>
    %45 = arith.mulf %44, %42 : vector<8x32xf32>
    %46 = arith.addf %0, %45 : vector<8x32xf32>
    %c0_24 = arith.constant 0 : index
    %c0_25 = arith.constant 0 : index
    %47 = vector.load %arg9[%c0_24, %c0_25] : memref<8x32xf32, #tpu.memory_space<vmem>>, vector<8x32xf32>
    tpu.vector_store %arg9[%c0_24, %c0_25], %46 {strides = array<i32>} : memref<8x32xf32, #tpu.memory_space<vmem>>, vector<8x32xf32>,
    return
  }
  func.func @transform_0(%arg0: i32) -> (i32, i32) {
    %c0_i32 = arith.constant 0 : i32
    %c0_i32_0 = arith.constant 0 : i32
    return %arg0, %c0_i32 : i32, i32
  }
  func.func @transform_1(%arg0: i32) -> (i32, i32) {
    %c0_i32 = arith.constant 0 : i32
    %c0_i32_0 = arith.constant 0 : i32
    %c0_i32_1 = arith.constant 0 : i32
    return %c0_i32, %c0_i32_0 : i32, i32
  }
  func.func @transform_2(%arg0: i32) -> (i32, i32) {
    %c0_i32 = arith.constant 0 : i32
    %c0_i32_0 = arith.constant 0 : i32
    %c0_i32_1 = arith.constant 0 : i32
    return %c0_i32, %c0_i32_0 : i32, i32
  }
  func.func @transform_3(%arg0: i32) -> (i32, i32) {
    %c0_i32 = arith.constant 0 : i32
    %c0_i32_0 = arith.constant 0 : i32
    %c0_i32_1 = arith.constant 0 : i32
    return %c0_i32, %c0_i32_0 : i32, i32
  }
  func.func @transform_4(%arg0: i32) -> (i32, i32) {
    %c0_i32 = arith.constant 0 : i32
    %c0_i32_0 = arith.constant 0 : i32
    %c0_i32_1 = arith.constant 0 : i32
    return %c0_i32, %c0_i32_0 : i32, i32
  }
  func.func @transform_5(%arg0: i32) -> (i32, i32) {
    %c0_i32 = arith.constant 0 : i32
    %c0_i32_0 = arith.constant 0 : i32
    %c0_i32_1 = arith.constant 0 : i32
    return %c0_i32, %c0_i32_0 : i32, i32
  }
  func.func @transform_6(%arg0: i32) -> (i32, i32) {
    %c0_i32 = arith.constant 0 : i32
    %c0_i32_0 = arith.constant 0 : i32
    %c0_i32_1 = arith.constant 0 : i32
    return %c0_i32, %c0_i32_0 : i32, i32
  }
  func.func @transform_7(%arg0: i32) -> (i32, i32) {
    %c0_i32 = arith.constant 0 : i32
    %c0_i32_0 = arith.constant 0 : i32
    %c0_i32_1 = arith.constant 0 : i32
    return %c0_i32, %c0_i32_0 : i32, i32
  }
  func.func @transform_8(%arg0: i32) -> (i32, i32) {
    %c0_i32 = arith.constant 0 : i32
    %c0_i32_0 = arith.constant 0 : i32
    return %arg0, %c0_i32 : i32, i32
  }
}

</mosaic_0001>

<llo_original>
// kernel: tpu_custom_call.1
$region0: #{tpu_custom_call.1}
  #allocation0 [shape = 'u32[]', space=smem, size = 0x4, offset = 0x4, fixed_abs, tag = 'smem constant byte address 0x4 - core index']
  #allocation1 [shape = 'u32[144,128]{1,0:T(1,128)}', space=vmem, size = 0x12000, scoped, tag = 'internal scratch']
  %s0 = inlined_call_operand.vmem [shape: f32[16,32], index: 0, kind: input, shape index: {}]
  %s1 = inlined_call_operand.vmem [shape: f32[1,32], index: 1, kind: input, shape index: {}]
  %s2 = inlined_call_operand.vmem [shape: f32[1,32], index: 2, kind: input, shape index: {}]
  %s3 = inlined_call_operand.vmem [shape: bf16[32,128], index: 3, kind: input, shape index: {}]
  %s4 = inlined_call_operand.vmem [shape: f32[1,128], index: 4, kind: input, shape index: {}]
  %s5 = inlined_call_operand.vmem [shape: bf16[128,32], index: 5, kind: input, shape index: {}]
  %s6 = inlined_call_operand.vmem [shape: f32[1,32], index: 6, kind: input, shape index: {}]
  %s7 = inlined_call_operand.vmem [shape: f32[1,32], index: 7, kind: input, shape index: {}]
  %s8 = inlined_call_operand.hbm [shape: f32[16,32], index: 8, kind: output, shape index: {}]
  %s9 = sld [smem:[#allocation0]]
  $region65: #{tpu_custom_call.1} parent=0
    _
  %s11 = ssub.s32 1, %s9
  %s12 = scalar_select 0, %s11, %s9
  $region1: #{tpu_custom_call.1} parent=0
    #allocation2 [shape = 'u8[8192]{0}', space=vmem, size = 0x2000, scoped, tag = 'output window, operand 0']
    #allocation3 [shape = 's32[2]{0}', space=sflag, size = 0x8, scoped, tag = 'scoped memory for tpu_custom_call.1']
    %13 = vsyncpa [#allocation3], 0
    %s14 = scalar_lea.sflag [#allocation3], 1
    %15 = vsyncpa %s14, 0
    loop: start=0, step=1, limit=4
    $region2: #{tpu_custom_call.1} parent=1 // loop_pre_header
      _
    $region3: #{tpu_custom_call.1} parent=1 // loop_header
      %s17 = sphi 0, %s21
      %p18 = scmp.ge.s32.totalorder %s17, 4
      %s27 = sphi 0, %s29
      %s30 = sphi 0, %s27
      %s31 = sphi 0, %s30
      %s47 = sphi 0, %s31
      %s51 = sphi 0, %s51
      %s53 = sphi 0, %s51
      %s54 = sphi 0, %s53
      %s68 = sphi 0, %s54
      %s72 = sphi 0, %s72
      %s74 = sphi 0, %s72
      %s75 = sphi 0, %s74
      %s89 = sphi 0, %s75
      %s93 = sphi 0, %s93
      %s95 = sphi 0, %s93
      %s96 = sphi 0, %s95
      %s110 = sphi 0, %s96
      %s114 = sphi 0, %s114
      %s116 = sphi 0, %s114
      %s117 = sphi 0, %s116
      %s131 = sphi 0, %s117
      %s135 = sphi 0, %s135
      %s137 = sphi 0, %s135
      %s138 = sphi 0, %s137
      %s152 = sphi 0, %s138
      %s156 = sphi 0, %s156
      %s158 = sphi 0, %s156
      %s159 = sphi 0, %s158
      %s173 = sphi 0, %s159
      %s177 = sphi 0, %s177
      %s179 = sphi 0, %s177
      %s180 = sphi 0, %s179
      %s194 = sphi 0, %s180
      %s200 = sphi 0, %s202
      %s203 = sphi 0, %s200
      %s204 = sphi 0, %s203
      %s220 = sphi 0, %s204
    $region4: #{tpu_custom_call.1} parent=1 // loop_header_branch
      %20 = sbr.rel (%p18) target = $region8
    $region5: #{tpu_custom_call.1} parent=1 // loop_body
      %s22 = ssub.s32 %s17, 1
      %s23 = ssub.s32 %s17, 2
      %s24 = sadd.s32 %s17, 1
      %s25 = ssub.s32 %s17, %s24
      %p26 = scmp.eq.s32.totalorder %s25, 0
      %s28 = sadd.s32 %s27, 1
      %s29 = scalar_select %p26, %s27, %s28
      %p32 = pneg %p26
      %p33 = scmp.eq.s32.totalorder %s17, 1
      %p34 = por %p32, %p33
      %p35 = scmp.ne.s32.totalorder %s27, %s30
      %p36 = scmp.eq.s32.totalorder %s17, 0
      %p37 = por %p35, %p36
      %p38 = scmp.ne.s32.totalorder %s27, %s30
      %p39 = scmp.eq.s32.totalorder %s22, 1
      %p40 = por %p38, %p39
      %p41 = scmp.ne.s32.totalorder %s30, %s31
      %p42 = scmp.eq.s32.totalorder %s22, 0
      %p43 = por %p41, %p42
      %p44 = scmp.ne.s32.totalorder %s30, %s31
      %p45 = scmp.eq.s32.totalorder %s23, 1
      %p46 = por %p44, %p45
      %p48 = scmp.ne.s32.totalorder %s31, %s47
      %p49 = scmp.eq.s32.totalorder %s23, 0
      %p50 = por %p48, %p49
      %s52 = sadd.s32 %s51, 1
      %p55 = scmp.eq.s32.totalorder %s17, 1
      %p56 = scmp.ne.s32.totalorder %s51, %s53
      %p57 = scmp.eq.s32.totalorder %s17, 0
      %p58 = por %p56, %p57
      %p59 = scmp.ne.s32.totalorder %s51, %s53
      %p60 = scmp.eq.s32.totalorder %s22, 1
      %p61 = por %p59, %p60
      %p62 = scmp.ne.s32.totalorder %s53, %s54
      %p63 = scmp.eq.s32.totalorder %s22, 0
      %p64 = por %p62, %p63
      %p65 = scmp.ne.s32.totalorder %s53, %s54
      %p66 = scmp.eq.s32.totalorder %s23, 1
      %p67 = por %p65, %p66
      %p69 = scmp.ne.s32.totalorder %s54, %s68
      %p70 = scmp.eq.s32.totalorder %s23, 0
      %p71 = por %p69, %p70
      %s73 = sadd.s32 %s72, 1
      %p76 = scmp.eq.s32.totalorder %s17, 1
      %p77 = scmp.ne.s32.totalorder %s72, %s74
      %p78 = scmp.eq.s32.totalorder %s17, 0
      %p79 = por %p77, %p78
      %p80 = scmp.ne.s32.totalorder %s72, %s74
      %p81 = scmp.eq.s32.totalorder %s22, 1
      %p82 = por %p80, %p81
      %p83 = scmp.ne.s32.totalorder %s74, %s75
      %p84 = scmp.eq.s32.totalorder %s22, 0
      %p85 = por %p83, %p84
      %p86 = scmp.ne.s32.totalorder %s74, %s75
      %p87 = scmp.eq.s32.totalorder %s23, 1
      %p88 = por %p86, %p87
      %p90 = scmp.ne.s32.totalorder %s75, %s89
      %p91 = scmp.eq.s32.totalorder %s23, 0
      %p92 = por %p90, %p91
      %s94 = sadd.s32 %s93, 1
      %p97 = scmp.eq.s32.totalorder %s17, 1
      %p98 = scmp.ne.s32.totalorder %s93, %s95
      %p99 = scmp.eq.s32.totalorder %s17, 0
      %p100 = por %p98, %p99
      %p101 = scmp.ne.s32.totalorder %s93, %s95
      %p102 = scmp.eq.s32.totalorder %s22, 1
      %p103 = por %p101, %p102
      %p104 = scmp.ne.s32.totalorder %s95, %s96
      %p105 = scmp.eq.s32.totalorder %s22, 0
      %p106 = por %p104, %p105
      %p107 = scmp.ne.s32.totalorder %s95, %s96
      %p108 = scmp.eq.s32.totalorder %s23, 1
      %p109 = por %p107, %p108
      %p111 = scmp.ne.s32.totalorder %s96, %s110
      %p112 = scmp.eq.s32.totalorder %s23, 0
      %p113 = por %p111, %p112
      %s115 = sadd.s32 %s114, 1
      %p118 = scmp.eq.s32.totalorder %s17, 1
      %p119 = scmp.ne.s32.totalorder %s114, %s116
      %p120 = scmp.eq.s32.totalorder %s17, 0
      %p121 = por %p119, %p120
      %p122 = scmp.ne.s32.totalorder %s114, %s116
      %p123 = scmp.eq.s32.totalorder %s22, 1
      %p124 = por %p122, %p123
      %p125 = scmp.ne.s32.totalorder %s116, %s117
      %p126 = scmp.eq.s32.totalorder %s22, 0
      %p127 = por %p125, %p126
      %p128 = scmp.ne.s32.totalorder %s116, %s117
      %p129 = scmp.eq.s32.totalorder %s23, 1
      %p130 = por %p128, %p129
      %p132 = scmp.ne.s32.totalorder %s117, %s131
      %p133 = scmp.eq.s32.totalorder %s23, 0
      %p134 = por %p132, %p133
      %s136 = sadd.s32 %s135, 1
      %p139 = scmp.eq.s32.totalorder %s17, 1
      %p140 = scmp.ne.s32.totalorder %s135, %s137
      %p141 = scmp.eq.s32.totalorder %s17, 0
      %p142 = por %p140, %p141
      %p143 = scmp.ne.s32.totalorder %s135, %s137
      %p144 = scmp.eq.s32.totalorder %s22, 1
      %p145 = por %p143, %p144
      %p146 = scmp.ne.s32.totalorder %s137, %s138
      %p147 = scmp.eq.s32.totalorder %s22, 0
      %p148 = por %p146, %p147
      %p149 = scmp.ne.s32.totalorder %s137, %s138
      %p150 = scmp.eq.s32.totalorder %s23, 1
      %p151 = por %p149, %p150
      %p153 = scmp.ne.s32.totalorder %s138, %s152
      %p154 = scmp.eq.s32.totalorder %s23, 0
      %p155 = por %p153, %p154
      %s157 = sadd.s32 %s156, 1
      %p160 = scmp.eq.s32.totalorder %s17, 1
      %p161 = scmp.ne.s32.totalorder %s156, %s158
      %p162 = scmp.eq.s32.totalorder %s17, 0
      %p163 = por %p161, %p162
      %p164 = scmp.ne.s32.totalorder %s156, %s158
      %p165 = scmp.eq.s32.totalorder %s22, 1
      %p166 = por %p164, %p165
      %p167 = scmp.ne.s32.totalorder %s158, %s159
      %p168 = scmp.eq.s32.totalorder %s22, 0
      %p169 = por %p167, %p168
      %p170 = scmp.ne.s32.totalorder %s158, %s159
      %p171 = scmp.eq.s32.totalorder %s23, 1
      %p172 = por %p170, %p171
      %p174 = scmp.ne.s32.totalorder %s159, %s173
      %p175 = scmp.eq.s32.totalorder %s23, 0
      %p176 = por %p174, %p175
      %s178 = sadd.s32 %s177, 1
      %p181 = scmp.eq.s32.totalorder %s17, 1
      %p182 = scmp.ne.s32.totalorder %s177, %s179
      %p183 = scmp.eq.s32.totalorder %s17, 0
      %p184 = por %p182, %p183
      %p185 = scmp.ne.s32.totalorder %s177, %s179
      %p186 = scmp.eq.s32.totalorder %s22, 1
      %p187 = por %p185, %p186
      %p188 = scmp.ne.s32.totalorder %s179, %s180
      %p189 = scmp.eq.s32.totalorder %s22, 0
      %p190 = por %p188, %p189
      %p191 = scmp.ne.s32.totalorder %s179, %s180
      %p192 = scmp.eq.s32.totalorder %s23, 1
      %p193 = por %p191, %p192
      %p195 = scmp.ne.s32.totalorder %s180, %s194
      %p196 = scmp.eq.s32.totalorder %s23, 0
      %p197 = por %p195, %p196
      %s198 = ssub.s32 %s17, %s24
      %p199 = scmp.eq.s32.totalorder %s198, 0
      %s201 = sadd.s32 %s200, 1
      %s202 = scalar_select %p199, %s200, %s201
      %p205 = pneg %p199
      %p206 = scmp.eq.s32.totalorder %s17, 1
      %p207 = por %p205, %p206
      %p208 = scmp.ne.s32.totalorder %s200, %s203
      %p209 = scmp.eq.s32.totalorder %s17, 0
      %p210 = por %p208, %p209
      %p211 = scmp.ne.s32.totalorder %s200, %s203
      %p212 = scmp.eq.s32.totalorder %s22, 1
      %p213 = por %p211, %p212
      %p214 = scmp.ne.s32.totalorder %s203, %s204
      %p215 = scmp.eq.s32.totalorder %s22, 0
      %p216 = por %p214, %p215
      %p217 = scmp.ne.s32.totalorder %s203, %s204
      %p218 = scmp.eq.s32.totalorder %s23, 1
      %p219 = por %p217, %p218
      %p221 = scmp.ne.s32.totalorder %s204, %s220
      %p222 = scmp.eq.s32.totalorder %s23, 0
      %p223 = por %p221, %p222
      %p224 = scmp.le.s32.totalorder 1, %s17
      %p225 = scmp.lt.s32.totalorder %s17, 3
      %p226 = pnand %p224, %p225
      %p227 = pneg %p226
      // Predicated region
      $region9: #{tpu_custom_call.1} parent=5 // pred_check
        _
      $region10: #{tpu_custom_call.1} parent=5 // pred_check_branch
        %229 = sbr.rel (%p226) target = $region12
      $region11: #{tpu_custom_call.1} parent=5 // pred_region
        %s230 = ssub.s32 %s17, 1
        // Predicated region
        $region13: #{tpu_custom_call.1} parent=11 // pred_check
          %p231 = pneg %p64
        $region14: #{tpu_custom_call.1} parent=11 // pred_check_branch
          %233 = sbr.rel (%p231) target = $region16
        $region15: #{tpu_custom_call.1} parent=11 // pred_region
          _
        $region16: #{tpu_custom_call.1} parent=11 // pred_fallthru
          _
        // Predicated region
        $region17: #{tpu_custom_call.1} parent=11 // pred_check
          %p234 = pneg %p85
        $region18: #{tpu_custom_call.1} parent=11 // pred_check_branch
          %236 = sbr.rel (%p234) target = $region20
        $region19: #{tpu_custom_call.1} parent=11 // pred_region
          _
        $region20: #{tpu_custom_call.1} parent=11 // pred_fallthru
          _
        // Predicated region
        $region21: #{tpu_custom_call.1} parent=11 // pred_check
          %p237 = pneg %p106
        $region22: #{tpu_custom_call.1} parent=11 // pred_check_branch
          %239 = sbr.rel (%p237) target = $region24
        $region23: #{tpu_custom_call.1} parent=11 // pred_region
          _
        $region24: #{tpu_custom_call.1} parent=11 // pred_fallthru
          _
        // Predicated region
        $region25: #{tpu_custom_call.1} parent=11 // pred_check
          %p240 = pneg %p127
        $region26: #{tpu_custom_call.1} parent=11 // pred_check_branch
          %242 = sbr.rel (%p240) target = $region28
        $region27: #{tpu_custom_call.1} parent=11 // pred_region
          _
        $region28: #{tpu_custom_call.1} parent=11 // pred_fallthru
          _
        // Predicated region
        $region29: #{tpu_custom_call.1} parent=11 // pred_check
          %p243 = pneg %p148
        $region30: #{tpu_custom_call.1} parent=11 // pred_check_branch
          %245 = sbr.rel (%p243) target = $region32
        $region31: #{tpu_custom_call.1} parent=11 // pred_region
          _
        $region32: #{tpu_custom_call.1} parent=11 // pred_fallthru
          _
        // Predicated region
        $region33: #{tpu_custom_call.1} parent=11 // pred_check
          %p246 = pneg %p169
        $region34: #{tpu_custom_call.1} parent=11 // pred_check_branch
          %248 = sbr.rel (%p246) target = $region36
        $region35: #{tpu_custom_call.1} parent=11 // pred_region
          _
        $region36: #{tpu_custom_call.1} parent=11 // pred_fallthru
          _
        // Predicated region
        $region37: #{tpu_custom_call.1} parent=11 // pred_check
          %p249 = pneg %p190
        $region38: #{tpu_custom_call.1} parent=11 // pred_check_branch
          %251 = sbr.rel (%p249) target = $region40
        $region39: #{tpu_custom_call.1} parent=11 // pred_region
          _
        $region40: #{tpu_custom_call.1} parent=11 // pred_fallthru
          _
      $region12: #{tpu_custom_call.1} parent=5 // pred_fallthru
        _
      %p252 = scmp.lt.s32.totalorder %s17, 2
      // Predicated region
      $region41: #{tpu_custom_call.1} parent=5 // pred_check
        %p253 = pneg %p252
      $region42: #{tpu_custom_call.1} parent=5 // pred_check_branch
        %255 = sbr.rel (%p253) target = $region44
      $region43: #{tpu_custom_call.1} parent=5 // pred_region
        // Predicated region
        $region45: #{tpu_custom_call.1} parent=43 // pred_check
          %p256 = pneg %p37
        $region46: #{tpu_custom_call.1} parent=43 // pred_check_branch
          %258 = sbr.rel (%p256) target = $region48
        $region47: #{tpu_custom_call.1} parent=43 // pred_region
          %p259 = scmp.lt.s32.totalorder %s17, 1
          %s260 = scalar_select %p259, %s17, 1
          %s261 = smul.addr %s260, 8
          %s262 = scalar_lea.vmem %s0, %s261
        $region48: #{tpu_custom_call.1} parent=43 // pred_fallthru
          _
      $region44: #{tpu_custom_call.1} parent=5 // pred_fallthru
        _
      %p263 = scmp.le.s32.totalorder 1, %s17
      %p264 = scmp.lt.s32.totalorder %s17, 3
      %p265 = pnand %p263, %p264
      %p266 = pneg %p265
      // Predicated region
      $region49: #{tpu_custom_call.1} parent=5 // pred_check
        _
      $region50: #{tpu_custom_call.1} parent=5 // pred_check_branch
        %268 = sbr.rel (%p265) target = $region52
      $region51: #{tpu_custom_call.1} parent=5 // pred_region
        %s269 = ssub.s32 %s17, 1
        %p270 = scmp.lt.s32.totalorder %s22, 1
        %s271 = scalar_select %p270, %s22, 1
        %s272 = smul.addr %s271, 8
        %s273 = scalar_lea.vmem %s0, %s272
        %p274 = pneg %p43
        %p275 = pneg %p40
        %p276 = pneg %p64
        %p277 = pneg %p61
        %p278 = pneg %p85
        %p279 = pneg %p82
        %p280 = pneg %p106
        %p281 = pneg %p103
        %p282 = pneg %p127
        %p283 = pneg %p124
        %p284 = pneg %p148
        %p285 = pneg %p145
        %p286 = pneg %p169
        %p287 = pneg %p166
        %p288 = pneg %p190
        %p289 = pneg %p187
        %p290 = pneg %p216
        %p291 = pneg %p213
        %s292 = sand.u32 %s203, 1
        %s293 = scalar_lea.sflag [#allocation3], %s292
        %s294 = sand.u32 %s203, 1
        %s295 = smul.addr %s294, 8
        %s296 = scalar_lea.vmem [#allocation2], %s295
        %p297 = scmp.lt.s32.totalorder %s22, 1
        %s298 = scalar_select %p297, %s22, 1
        %s299 = smul.addr %s298, 8
        %s300 = scalar_lea.vmem %s0, %s299
        %v302 = vld [vmem:[%s300] sm:$0xff]
        %vm303 = vcmask 261120
        %v304 = vsel %vm303, %v302, 0.0
        %305 = vadd.xlane.f32.xlu0 %v304
        %v306 = vpop.xlane.xlu0 %305
        %v307 = vrcp.pop 32.0
        %v308 = vmul.f32 %v306, %v307
        %v309 = vsub.f32 %v302, %v308
        %v310 = vmul.f32 %v309, %v309
        %v311 = vsel %vm303, %v310, 0.0
        %312 = vadd.xlane.f32.xlu0 %v311
        %v313 = vpop.xlane.xlu0 %312
        %v314 = vmul.f32 %v313, %v307
        %v315 = vadd.f32 %v314, 1e-05
        %v316 = vrsqrt.pop %v315
        %v317 = vmul.f32 %v309, %v316
        %v318 = vld [vmem:[%s1] sm:$0x1]
        %v320 = vlaneseq
        %v321 = vshrl.u32 %v320, 7
        %v322 = vsub.s32 0, %v321
        %v323 = vrot.slane %v318, %v322
        %v325 = vmul.f32 %v317, %v323
        %v326 = vld [vmem:[%s2] sm:$0x1]
        %v328 = vlaneseq
        %v329 = vshrl.u32 %v328, 7
        %v330 = vsub.s32 0, %v329
        %v331 = vrot.slane %v326, %v330
        %v333 = vadd.f32 %v325, %v331
        %v334 = vpack.c.bf16 %v333, %v333
        %v335 = vld [vmem:[%s3] sm:$0xf]
        %v336 = vld [vmem:[%s3 + $0x4] sm:$0xf]
        %v337 = vld [vmem:[%s3 + $0x8] sm:$0xf]
        %v338 = vld [vmem:[%s3 + $0xc] sm:$0xf]
        %v339 = vld [vmem:[%s4] sm:$0x1]
        %v341 = vlaneseq
        %v342 = vshrl.u32 %v341, 7
        %v343 = vsub.s32 0, %v342
        %v344 = vrot.slane %v339, %v343
        %v350 = vunpack.c.l.b16 %v335
        %v351 = vunpack.c.l.b16 %v336
        %v352 = vunpack.c.l.b16 %v337
        %v353 = vunpack.c.l.b16 %v338
        %v354 = vpack.c.b16 %v351, %v350
        %v355 = vpack.c.b16 %v353, %v352
        %v359 = vsel %vm303, %v334, 0
        %361 = vmatprep.subr.bf16.mxu0 0
        %362 = vmatpush1.bf16.msra.mxu0 0
        %363 = vmatprep.subr.bf16.mxu0 0
        %364 = vmatpush1.bf16.msra.mxu0 0
        %365 = vmatprep.subr.bf16.mxu0 0
        %366 = vmatpush1.bf16.msra.mxu0 0
        %367 = vmatprep.subr.bf16.mxu0 0
        %368 = vmatpush1.bf16.msra.mxu0 0
        %369 = vmatprep.subr.bf16.mxu0 0
        %370 = vmatpush1.bf16.msra.mxu0 0
        %371 = vmatprep.subr.bf16.mxu0 0
        %372 = vmatpush1.bf16.msra.mxu0 0
        %373 = vmatprep.subr.bf16.mxu0 0
        %374 = vmatpush1.bf16.msra.mxu0 %v355
        %375 = vmatprep.subr.bf16.mxu0 0
        %376 = vmatpush1.bf16.msra.mxu0 %v354
        %377 = vmatprep.subr.bf16.mxu0 0
        %378 = vmatpush2.bf16.msra.mxu0 0
        %379 = vmatprep.subr.bf16.mxu0 0
        %380 = vmatpush2.bf16.msra.mxu0 0
        %381 = vmatprep.subr.bf16.mxu0 0
        %382 = vmatpush2.bf16.msra.mxu0 0
        %383 = vmatprep.subr.bf16.mxu0 0
        %384 = vmatpush2.bf16.msra.mxu0 0
        %385 = vmatprep.subr.bf16.mxu0 0
        %386 = vmatpush2.bf16.msra.mxu0 0
        %387 = vmatprep.subr.bf16.mxu0 0
        %388 = vmatpush2.bf16.msra.mxu0 0
        %389 = vmatprep.subr.bf16.mxu0 0
        %390 = vmatpush2.bf16.msra.mxu0 0
        %391 = vmatprep.subr.bf16.mxu0 0
        %392 = vmatpush2.bf16.msra.mxu0 0
        %393 = vmatprep.mubr.bf16.mxu0 0
        %394 = vmatmul.mubr.bf16.gmra.mxu0 %v359
        %v395 = vpop.f32.mrf.mxu0
        %v396 = vadd.f32 %v344, %v395
        %v397 = vpop.f32.mrf.mxu0
        %v398 = vpop.f32.mrf.mxu0
        %v399 = vpop.f32.mrf.mxu0
        %400 = vdwg.mxu0
        %v401 = vmul.f32 %v396, 0.5
        %v402 = vmul.f32 %v396, 0.70710677
        %v403 = verf.f32.pop %v402
        %v404 = vadd.f32 %v403, 1.0
        %v405 = vmul.f32 %v401, %v404
        %v406 = vpack.c.bf16 %v405, %v405
        %v407 = vld [vmem:[%s5] sm:$0xf]
        %v408 = vld [vmem:[%s5 + $0x4] sm:$0xf]
        %v409 = vld [vmem:[%s5 + $0x8] sm:$0xf]
        %v410 = vld [vmem:[%s5 + $0xc] sm:$0xf]
        %v411 = vld [vmem:[%s5 + $0x10] sm:$0xf]
        %v412 = vld [vmem:[%s5 + $0x14] sm:$0xf]
        %v413 = vld [vmem:[%s5 + $0x18] sm:$0xf]
        %v414 = vld [vmem:[%s5 + $0x1c] sm:$0xf]
        %v415 = vld [vmem:[%s5 + $0x20] sm:$0xf]
        %v416 = vld [vmem:[%s5 + $0x24] sm:$0xf]
        %v417 = vld [vmem:[%s5 + $0x28] sm:$0xf]
        %v418 = vld [vmem:[%s5 + $0x2c] sm:$0xf]
        %v419 = vld [vmem:[%s5 + $0x30] sm:$0xf]
        %v420 = vld [vmem:[%s5 + $0x34] sm:$0xf]
        %v421 = vld [vmem:[%s5 + $0x38] sm:$0xf]
        %v422 = vld [vmem:[%s5 + $0x3c] sm:$0xf]
        %v423 = vld [vmem:[%s6] sm:$0x1]
        %v425 = vlaneseq
        %v426 = vshrl.u32 %v425, 7
        %v427 = vsub.s32 0, %v426
        %v428 = vrot.slane %v423, %v427
        %v446 = vunpack.c.l.b16 %v407
        %v447 = vunpack.c.l.b16 %v408
        %v448 = vunpack.c.l.b16 %v409
        %v449 = vunpack.c.l.b16 %v410
        %v450 = vunpack.c.l.b16 %v411
        %v451 = vunpack.c.l.b16 %v412
        %v452 = vunpack.c.l.b16 %v413
        %v453 = vunpack.c.l.b16 %v414
        %v454 = vunpack.c.l.b16 %v415
        %v455 = vunpack.c.l.b16 %v416
        %v456 = vunpack.c.l.b16 %v417
        %v457 = vunpack.c.l.b16 %v418
        %v458 = vunpack.c.l.b16 %v419
        %v459 = vunpack.c.l.b16 %v420
        %v460 = vunpack.c.l.b16 %v421
        %v461 = vunpack.c.l.b16 %v422
        %v462 = vpack.c.b16 %v447, %v446
        %v463 = vpack.c.b16 %v449, %v448
        %v464 = vpack.c.b16 %v451, %v450
        %v465 = vpack.c.b16 %v453, %v452
        %v466 = vpack.c.b16 %v455, %v454
        %v467 = vpack.c.b16 %v457, %v456
        %v468 = vpack.c.b16 %v459, %v458
        %v469 = vpack.c.b16 %v461, %v460
        %478 = vmatprep.subr.bf16.mxu0 0
        %479 = vmatpush1.bf16.msra.mxu0 %v469
        %480 = vmatprep.subr.bf16.mxu0 0
        %481 = vmatpush1.bf16.msra.mxu0 %v468
        %482 = vmatprep.subr.bf16.mxu0 0
        %483 = vmatpush1.bf16.msra.mxu0 %v467
        %484 = vmatprep.subr.bf16.mxu0 0
        %485 = vmatpush1.bf16.msra.mxu0 %v466
        %486 = vmatprep.subr.bf16.mxu0 0
        %487 = vmatpush1.bf16.msra.mxu0 %v465
        %488 = vmatprep.subr.bf16.mxu0 0
        %489 = vmatpush1.bf16.msra.mxu0 %v464
        %490 = vmatprep.subr.bf16.mxu0 0
        %491 = vmatpush1.bf16.msra.mxu0 %v463
        %492 = vmatprep.subr.bf16.mxu0 0
        %493 = vmatpush1.bf16.msra.mxu0 %v462
        %494 = vmatprep.subr.bf16.mxu0 0
        %495 = vmatpush2.bf16.msra.mxu0 0
        %496 = vmatprep.subr.bf16.mxu0 0
        %497 = vmatpush2.bf16.msra.mxu0 0
        %498 = vmatprep.subr.bf16.mxu0 0
        %499 = vmatpush2.bf16.msra.mxu0 0
        %500 = vmatprep.subr.bf16.mxu0 0
        %501 = vmatpush2.bf16.msra.mxu0 0
        %502 = vmatprep.subr.bf16.mxu0 0
        %503 = vmatpush2.bf16.msra.mxu0 0
        %504 = vmatprep.subr.bf16.mxu0 0
        %505 = vmatpush2.bf16.msra.mxu0 0
        %506 = vmatprep.subr.bf16.mxu0 0
        %507 = vmatpush2.bf16.msra.mxu0 0
        %508 = vmatprep.subr.bf16.mxu0 0
        %509 = vmatpush2.bf16.msra.mxu0 0
        %510 = vmatprep.mubr.bf16.mxu0 0
        %511 = vmatmul.mubr.bf16.gmra.mxu0 %v406
        %v512 = vpop.f32.mrf.mxu0
        %v513 = vadd.f32 %v428, %v512
        %v514 = vpop.f32.mrf.mxu0
        %v515 = vpop.f32.mrf.mxu0
        %v516 = vpop.f32.mrf.mxu0
        %517 = vdwg.mxu0
        %v518 = vld [vmem:[%s7] sm:$0x1]
        %v520 = vlaneseq
        %v521 = vshrl.u32 %v520, 7
        %v522 = vsub.s32 0, %v521
        %v523 = vrot.slane %v518, %v522
        %v525 = vmul.f32 %v523, %v513
        %v526 = vadd.f32 %v302, %v525
        %527 = vst.msk [vmem:[%s296] sm:$0xff] %vm303, %v526
        %s528 = sand.u32 %s203, 1
        %s529 = scalar_lea.sflag [#allocation3], %s528
        %s530 = sand.u32 %s203, 1
        %s531 = smul.addr %s530, 8
        %s532 = scalar_lea.vmem [#allocation2], %s531
        // Predicated region
        $region53: #{tpu_custom_call.1} parent=51 // pred_check
          %p533 = pneg %p213
        $region54: #{tpu_custom_call.1} parent=51 // pred_check_branch
          %535 = sbr.rel (%p533) target = $region56
        $region55: #{tpu_custom_call.1} parent=51 // pred_region
          %s537 = ssub.s32 128, 128
          %538 = vsyncadd %s529, %s537
          %s539 = smul.addr %s22, 128
          %s540 = scalar_lea.hbm %s8, %s539
          %s542 = sshll.u32 %s532, 4
          %s543 = int_to_ptr.vmem [resolvable:$true] %s542
          %545 = dma.vmem_to_hbm [thread:$0]  %s543, 128, %s540, %s529
        $region56: #{tpu_custom_call.1} parent=51 // pred_fallthru
          _
      $region52: #{tpu_custom_call.1} parent=5 // pred_fallthru
        _
      %p546 = scmp.le.s32.totalorder 2, %s17
      // Predicated region
      $region57: #{tpu_custom_call.1} parent=5 // pred_check
        %p547 = pneg %p546
      $region58: #{tpu_custom_call.1} parent=5 // pred_check_branch
        %549 = sbr.rel (%p547) target = $region60
      $region59: #{tpu_custom_call.1} parent=5 // pred_region
        %s550 = ssub.s32 %s17, 2
        // Predicated region
        $region61: #{tpu_custom_call.1} parent=59 // pred_check
          %p551 = pneg %p219
        $region62: #{tpu_custom_call.1} parent=59 // pred_check_branch
          %553 = sbr.rel (%p551) target = $region64
        $region63: #{tpu_custom_call.1} parent=59 // pred_region
          %s554 = sand.u32 %s204, 1
          %s555 = scalar_lea.sflag [#allocation3], %s554
          %s556 = sand.u32 %s204, 1
          %s557 = smul.addr %s556, 8
          %s558 = scalar_lea.vmem [#allocation2], %s557
          %559 = dma.done %s555, 128
        $region64: #{tpu_custom_call.1} parent=59 // pred_fallthru
          _
      $region60: #{tpu_custom_call.1} parent=5 // pred_fallthru
        _
    $region6: #{tpu_custom_call.1} parent=1 // loop_footer
      %s21 = sadd.s32 1, %s17
    $region7: #{tpu_custom_call.1} parent=1 // loop_footer_branch
      %16 = sbr.rel target = $region3
    $region8: #{tpu_custom_call.1} parent=1 // loop_exit
      _
    %560 = vsyncpa [#allocation3], 1
    %s561 = scalar_lea.sflag [#allocation3], 1
    %562 = vsyncpa %s561, 1

</llo_original>
